<compile_context>
chip_gen: v7x
topology: tpu7x:2x2x1
jax: 0.10.0
libtpu: 0.0.40
codegen_flags: <defaults>
</compile_context>

<pallas_src>
import jax
import jax.numpy as jnp
from jax import lax
from jax.experimental import pallas as pl
from jax.experimental.pallas import tpu as pltpu

# Problem sizes
N, IC, H, W = 2, 4, 16, 16        # input: (2, 4, 16, 16) NCHW
OC, K = 8, 3                      # conv: 4 -> 8 channels, 3x3, pad 1
HO, WO = H // 2, W // 2           # after 2x2 max pool -> (8, 8)
SP = HO * WO                      # 64 spatial positions per pooled image
FEAT = OC * SP                    # 512 flattened features per sample
NCLS = 10
COLS = 4 * N * SP                 # 512 conv-output columns, ordered (hi, wi, n, ho, wo)
FLAT = OC * N * SP                # 1024 pooled values laid out (oc, n, s) along lanes

NT_DIMS = (((1,), (1,)), ((), ()))   # contract last dim of both operands (A @ B^T)


# ----------------------------- fused Pallas kernel ---------------------------

def fused_forward_kernel(p_ref, wc_ref, bc_ref, wf_ref, bf_ref, o_ref):
    # ---- Conv2d(4->8, 3x3, pad=1): ONE lane-dense MXU matmul, bf16 in / f32 acc ----
    # p_ref: (36, 512) bf16 im2col patches^T, wc_ref: (8, 36) bf16
    y = jnp.dot(wc_ref[...], p_ref[...], preferred_element_type=jnp.float32)  # (8, 512)

    # ---- MaxPool2d(2): the 4 window taps are 4 contiguous 128-lane chunks ----
    # bias + ReLU applied AFTER the max (per-row bias + monotone ReLU commute with it),
    # kept in f32 (v5e has no bf16 VPU).
    c = N * SP                                                   # 128
    m = jnp.maximum(jnp.maximum(y[:, 0 * c:1 * c], y[:, 1 * c:2 * c]),
                    jnp.maximum(y[:, 2 * c:3 * c], y[:, 3 * c:4 * c]))         # (8, 128)
    pooled = jnp.maximum(m + bc_ref[...], 0.0)                   # (8, 128), lane = n*64+s

    # ---- Flatten: lay the 8 channel rows along lanes (128-aligned copies) ----
    flat = jnp.concatenate([pooled[i:i + 1, :] for i in range(OC)], axis=1)    # (1, 1024)
    flat = flat.astype(jnp.bfloat16)                             # lane k = oc*128 + n*64 + s

    # ---- Linear(512 -> 10), both samples at once: ONE trans-B MXU matmul ----
    # wf_ref: (2*NCLS, 1024) bf16 block weight, row = n*10 + cls (zero outside sample n).
    z = lax.dot_general(flat, wf_ref[...], NT_DIMS,
                        preferred_element_type=jnp.float32)      # (1, 20)
    z = z + bf_ref[...]                                          # bias prepacked as (1, 20)

    # Split the 20 logits into the (2, 10) output block and store once.
    o_ref[...] = jnp.concatenate([z[:, :NCLS], z[:, NCLS:]], axis=0).astype(o_ref.dtype)


# ------------------------------- JAX glue -------------------------------------

def _im2col_pool_layout(x):
    """(N,IC,H,W) -> (IC*K*K, 512) bf16 patches^T.

    Row index  = ic*9 + kh*3 + kw   (matches conv_w.reshape(OC, IC*K*K))
    Col index  = hi*256 + wi*128 + n*64 + ho*8 + wo   (h = 2*ho+hi, w = 2*wo+wi)
    so the kernel pools with 4 contiguous 128-lane slices.
    """
    xp = jnp.pad(x, ((0, 0), (0, 0), (1, 1), (1, 1)))
    sl = [xp[:, :, kh:kh + H, kw:kw + W] for kh in range(K) for kw in range(K)]
    p = jnp.stack(sl, axis=2)                      # (N, IC, 9, H, W)
    p = p.reshape(N, IC, K * K, HO, 2, WO, 2)      # split h=(ho,hi), w=(wo,wi)
    p = p.transpose(1, 2, 4, 6, 0, 3, 5)           # (IC, 9, hi, wi, N, HO, WO)
    return p.reshape(IC * K * K, COLS).astype(jnp.bfloat16)      # (36, 512)


def prepare_params(params):
    """One-time repack of PyTorch-layout weights into kernel layouts (hoisted out of
    the hot path).  The FC weight is packed lane-dense as a (2*NCLS, 1024) block
    matrix so the whole classifier is a single trans-B matmul in the kernel."""
    conv_w, conv_b, fc_w, fc_b = params
    wc = conv_w.reshape(OC, IC * K * K).astype(jnp.bfloat16)     # (8, 36)
    bc = conv_b.reshape(OC, 1).astype(jnp.float32)               # (8, 1), f32 VPU tail

    # Block FC weight: wf[n*10 + cls, oc*128 + n'*64 + s] = fc_w[cls, oc*64 + s] * (n==n')
    w3 = fc_w.reshape(NCLS, OC, SP)                              # (10, 8, 64) [cls, oc, s]
    wbig = jnp.zeros((N * NCLS, OC, N, SP), jnp.float32)
    for n in range(N):
        wbig = wbig.at[n * NCLS:(n + 1) * NCLS, :, n, :].set(w3)
    wf = wbig.reshape(N * NCLS, FLAT).astype(jnp.bfloat16)       # (20, 1024) lane-dense
    bf = jnp.tile(fc_b.reshape(1, NCLS), (1, N)).astype(jnp.float32)   # (1, 20)
    return wc, bc, wf, bf


def convnet_forward(x, kparams):
    wc, bc, wf, bf = kparams
    patches = _im2col_pool_layout(x)               # bf16, 36 KB (fusible into the call)
    vmem = pl.BlockSpec(memory_space=pltpu.MemorySpace.VMEM)
    flops = 2 * OC * (IC * K * K) * COLS + 2 * FLAT * (N * NCLS)
    bytes_accessed = (patches.size * 2 + wc.size * 2 + bc.size * 4
                      + wf.size * 2 + bf.size * 4 + N * NCLS * 4)
    return pl.pallas_call(
        fused_forward_kernel,
        out_shape=jax.ShapeDtypeStruct((N, NCLS), jnp.float32),
        in_specs=[vmem, vmem, vmem, vmem, vmem],
        out_specs=vmem,
        compiler_params=pltpu.CompilerParams(
            # Let XLA fuse the im2col producer into the patch operand (no extra
            # HBM round trip); weights come straight from params, nothing to fuse.
            allow_input_fusion=[True, False, False, False, False]),
        cost_estimate=pl.CostEstimate(flops=flops, transcendentals=0,
                                      bytes_accessed=bytes_accessed),
    )(patches, wc, bc, wf, bf)


def reference_forward(x, params):
    # Independent pure-JAX f32 reference (mirrors the PyTorch forward).
    conv_w, conv_b, fc_w, fc_b = params
    y = lax.conv_general_dilated(
        x, conv_w, window_strides=(1, 1), padding=((1, 1), (1, 1)),
        dimension_numbers=("NCHW", "OIHW", "NCHW"))
    y = jnp.maximum(y + conv_b.reshape(1, OC, 1, 1), 0.0)
    y = lax.reduce_window(y, -jnp.inf, lax.max, (1, 1, 2, 2), (1, 1, 2, 2), "VALID")
    flat = y.reshape(N, FEAT)
    return flat @ fc_w.T + fc_b


def init_params(key):
    # Deterministic synthetic parameters (Kaiming-ish scaling).
    kw, kb, kfw, kfb = jax.random.split(key, 4)
    conv_w = jax.random.normal(kw, (OC, IC, K, K), jnp.float32) * (2.0 / (IC * K * K)) ** 0.5
    conv_b = jax.random.normal(kb, (OC,), jnp.float32) * 0.01
    fc_w = jax.random.normal(kfw, (NCLS, FEAT), jnp.float32) * (2.0 / FEAT) ** 0.5
    fc_b = jax.random.normal(kfb, (NCLS,), jnp.float32) * 0.01
    return conv_w, conv_b, fc_w, fc_b


if __name__ == "__main__":
    key = jax.random.PRNGKey(0)
    kx, kp = jax.random.split(key)
    params = init_params(kp)
    x = jax.random.normal(kx, (N, IC, H, W), jnp.float32)

    kparams = prepare_params(params)               # weight repack done once
    out = jax.block_until_ready(jax.jit(convnet_forward)(x, kparams))

    ref = jax.block_until_ready(reference_forward(x, params))
    assert out.shape == (N, NCLS)
    # bf16 matmul inputs with f32 accumulation: tolerance loosened per review
    # (a layout/ordering bug would produce O(1) errors, far above this).
    assert jnp.allclose(out, ref, atol=2e-1, rtol=2e-2), "mismatch vs reference"

    print("KERNEL_OK")
</pallas_src>

<mosaic_0001>
module attributes {stable_mosaic.version = 11 : i64} {
  func.func @fused_forward_kernel(%arg0: memref<36x512xbf16, #tpu.memory_space<vmem>>, %arg1: memref<8x36xbf16, #tpu.memory_space<vmem>>, %arg2: memref<8x1xf32, #tpu.memory_space<vmem>>, %arg3: memref<20x1024xbf16, #tpu.memory_space<vmem>>, %arg4: memref<1x20xf32, #tpu.memory_space<vmem>>, %arg5: memref<2x10xf32, #tpu.memory_space<vmem>>) attributes {dimension_semantics = [], scalar_prefetch = 0 : i64, scratch_operands = 0 : i64, tpu.core_type = #tpu.core_type<tc>} {
    %c0 = arith.constant 0 : index
    %c0_0 = arith.constant 0 : index
    %0 = vector.load %arg1[%c0, %c0_0] : memref<8x36xbf16, #tpu.memory_space<vmem>>, vector<8x36xbf16>
    %c0_1 = arith.constant 0 : index
    %c0_2 = arith.constant 0 : index
    %1 = vector.load %arg0[%c0_1, %c0_2] : memref<36x512xbf16, #tpu.memory_space<vmem>>, vector<36x512xbf16>
    %cst = arith.constant dense<0.000000e+00> : vector<8x512xf32>
    %2 = tpu.matmul %0, %1, %cst {dimension_numbers = #tpu.dot_dimension_numbers<[1], [0], [0], [1], [0, 0, 1, 1], [], []>} : vector<8x36xbf16>, vector<36x512xbf16>, vector<8x512xf32> -> vector<8x512xf32>
    %3 = vector.extract_strided_slice %2 {offsets = [0, 0], sizes = [8, 128], strides = [1, 1]} : vector<8x512xf32> to vector<8x128xf32>
    %4 = vector.extract_strided_slice %2 {offsets = [0, 128], sizes = [8, 128], strides = [1, 1]} : vector<8x512xf32> to vector<8x128xf32>
    %5 = arith.maximumf %3, %4 : vector<8x128xf32>
    %6 = vector.extract_strided_slice %2 {offsets = [0, 256], sizes = [8, 128], strides = [1, 1]} : vector<8x512xf32> to vector<8x128xf32>
    %7 = vector.extract_strided_slice %2 {offsets = [0, 384], sizes = [8, 128], strides = [1, 1]} : vector<8x512xf32> to vector<8x128xf32>
    %8 = arith.maximumf %6, %7 : vector<8x128xf32>
    %9 = arith.maximumf %5, %8 : vector<8x128xf32>
    %c0_3 = arith.constant 0 : index
    %c0_4 = arith.constant 0 : index
    %10 = vector.load %arg2[%c0_3, %c0_4] : memref<8x1xf32, #tpu.memory_space<vmem>>, vector<8x1xf32>
    %11 = vector.broadcast %10 : vector<8x1xf32> to vector<8x128xf32>
    %12 = arith.addf %9, %11 : vector<8x128xf32>
    %cst_5 = arith.constant 0.000000e+00 : f32
    %13 = vector.broadcast %cst_5 : f32 to vector<8x128xf32>
    %14 = arith.maximumf %12, %13 : vector<8x128xf32>
    %15 = vector.extract_strided_slice %14 {offsets = [0, 0], sizes = [1, 128], strides = [1, 1]} : vector<8x128xf32> to vector<1x128xf32>
    %16 = vector.extract_strided_slice %14 {offsets = [1, 0], sizes = [1, 128], strides = [1, 1]} : vector<8x128xf32> to vector<1x128xf32>
    %17 = vector.extract_strided_slice %14 {offsets = [2, 0], sizes = [1, 128], strides = [1, 1]} : vector<8x128xf32> to vector<1x128xf32>
    %18 = vector.extract_strided_slice %14 {offsets = [3, 0], sizes = [1, 128], strides = [1, 1]} : vector<8x128xf32> to vector<1x128xf32>
    %19 = vector.extract_strided_slice %14 {offsets = [4, 0], sizes = [1, 128], strides = [1, 1]} : vector<8x128xf32> to vector<1x128xf32>
    %20 = vector.extract_strided_slice %14 {offsets = [5, 0], sizes = [1, 128], strides = [1, 1]} : vector<8x128xf32> to vector<1x128xf32>
    %21 = vector.extract_strided_slice %14 {offsets = [6, 0], sizes = [1, 128], strides = [1, 1]} : vector<8x128xf32> to vector<1x128xf32>
    %22 = vector.extract_strided_slice %14 {offsets = [7, 0], sizes = [1, 128], strides = [1, 1]} : vector<8x128xf32> to vector<1x128xf32>
    %23 = tpu.concatenate %15, %16, %17, %18, %19, %20, %21, %22 in 1 : vector<1x128xf32>, vector<1x128xf32>, vector<1x128xf32>, vector<1x128xf32>, vector<1x128xf32>, vector<1x128xf32>, vector<1x128xf32>, vector<1x128xf32> -> vector<1x1024xf32>
    %24 = arith.truncf %23 : vector<1x1024xf32> to vector<1x1024xbf16>
    %c0_6 = arith.constant 0 : index
    %c0_7 = arith.constant 0 : index
    %25 = vector.load %arg3[%c0_6, %c0_7] : memref<20x1024xbf16, #tpu.memory_space<vmem>>, vector<20x1024xbf16>
    %cst_8 = arith.constant dense<0.000000e+00> : vector<1x20xf32>
    %26 = tpu.matmul %24, %25, %cst_8 {dimension_numbers = #tpu.dot_dimension_numbers<[1], [1], [0], [0], [0, 0, 1, 0], [], []>} : vector<1x1024xbf16>, vector<20x1024xbf16>, vector<1x20xf32> -> vector<1x20xf32>
    %c0_9 = arith.constant 0 : index
    %c0_10 = arith.constant 0 : index
    %27 = vector.load %arg4[%c0_9, %c0_10] : memref<1x20xf32, #tpu.memory_space<vmem>>, vector<1x20xf32>
    %28 = arith.addf %26, %27 : vector<1x20xf32>
    %29 = vector.extract_strided_slice %28 {offsets = [0, 0], sizes = [1, 10], strides = [1, 1]} : vector<1x20xf32> to vector<1x10xf32>
    %30 = vector.extract_strided_slice %28 {offsets = [0, 10], sizes = [1, 10], strides = [1, 1]} : vector<1x20xf32> to vector<1x10xf32>
    %31 = tpu.concatenate %29, %30 in 0 : vector<1x10xf32>, vector<1x10xf32> -> vector<2x10xf32>
    %c0_11 = arith.constant 0 : index
    %c0_12 = arith.constant 0 : index
    %32 = vector.load %arg5[%c0_11, %c0_12] : memref<2x10xf32, #tpu.memory_space<vmem>>, vector<2x10xf32>
    tpu.vector_store %arg5[%c0_11, %c0_12], %31 {strides = array<i32>} : memref<2x10xf32, #tpu.memory_space<vmem>>, vector<2x10xf32>,
    return
  }
}

</mosaic_0001>

<llo_original>
// kernel: convnet_forward.1
$region0: #{convnet_forward.1}
  #allocation0 [shape = 'u32[]', space=smem, size = 0x4, offset = 0x4, fixed_abs, tag = 'smem constant byte address 0x4 - core index']
  #allocation1 [shape = 'u32[144,128]{1,0:T(1,128)}', space=vmem, size = 0x12000, scoped, tag = 'internal scratch']
  %s0 = inlined_call_operand.vmem [shape: bf16[36,512], index: 0, kind: input, shape index: {}]
  %s1 = inlined_call_operand.vmem [shape: bf16[8,36], index: 1, kind: input, shape index: {}]
  %s2 = inlined_call_operand.vmem [shape: f32[8,1], index: 2, kind: input, shape index: {}]
  %s3 = inlined_call_operand.vmem [shape: bf16[20,1024], index: 3, kind: input, shape index: {}]
  %s4 = inlined_call_operand.vmem [shape: f32[1,20], index: 4, kind: input, shape index: {}]
  %s5 = inlined_call_operand.hbm [shape: f32[2,10], index: 5, kind: output, shape index: {}]
  %s6 = sld [smem:[#allocation0]]
  $region30: #{convnet_forward.1} parent=0
    _
  %s8 = ssub.s32 1, %s6
  %s9 = scalar_select 0, %s8, %s6
  $region1: #{convnet_forward.1} parent=0
    #allocation2 [shape = 'u8[1024]{0}', space=vmem, size = 0x400, scoped, tag = 'output window, operand 0, single buffered']
    #allocation3 [shape = 's32[1]{0}', space=sflag, size = 0x4, scoped, tag = 'scoped memory for convnet_forward.1']
    %10 = vsyncpa [#allocation3], 0
    // Predicated region
    $region2: #{convnet_forward.1} parent=1 // pred_check
      _
    $region3: #{convnet_forward.1} parent=1 // pred_check_branch
      %12 = sbr.rel (0) target = $region5
    $region4: #{convnet_forward.1} parent=1 // pred_region
      _
    $region5: #{convnet_forward.1} parent=1 // pred_fallthru
      _
    // Predicated region
    $region6: #{convnet_forward.1} parent=1 // pred_check
      _
    $region7: #{convnet_forward.1} parent=1 // pred_check_branch
      %14 = sbr.rel (0) target = $region9
    $region8: #{convnet_forward.1} parent=1 // pred_region
      _
    $region9: #{convnet_forward.1} parent=1 // pred_fallthru
      _
    // Predicated region
    $region10: #{convnet_forward.1} parent=1 // pred_check
      _
    $region11: #{convnet_forward.1} parent=1 // pred_check_branch
      %16 = sbr.rel (0) target = $region13
    $region12: #{convnet_forward.1} parent=1 // pred_region
      _
    $region13: #{convnet_forward.1} parent=1 // pred_fallthru
      _
    // Predicated region
    $region14: #{convnet_forward.1} parent=1 // pred_check
      _
    $region15: #{convnet_forward.1} parent=1 // pred_check_branch
      %18 = sbr.rel (0) target = $region17
    $region16: #{convnet_forward.1} parent=1 // pred_region
      _
    $region17: #{convnet_forward.1} parent=1 // pred_fallthru
      _
    // Predicated region
    $region18: #{convnet_forward.1} parent=1 // pred_check
      _
    $region19: #{convnet_forward.1} parent=1 // pred_check_branch
      %20 = sbr.rel (0) target = $region21
    $region20: #{convnet_forward.1} parent=1 // pred_region
      _
    $region21: #{convnet_forward.1} parent=1 // pred_fallthru
      _
    %v22 = vld [vmem:[%s1] sm:$0xf]
    %v23 = vld [vmem:[%s0] sm:$0xff]
    %v24 = vld [vmem:[%s0 + $0x8] sm:$0xff]
    %v25 = vld [vmem:[%s0 + $0x10] sm:$0xff]
    %v26 = vld [vmem:[%s0 + $0x18] sm:$0xff]
    %v27 = vld [vmem:[%s0 + $0x20] sm:$0xff]
    %v28 = vld [vmem:[%s0 + $0x28] sm:$0xff]
    %v29 = vld [vmem:[%s0 + $0x30] sm:$0xff]
    %v30 = vld [vmem:[%s0 + $0x38] sm:$0xff]
    %v31 = vld [vmem:[%s0 + $0x40] sm:$0x33]
    %v32 = vld [vmem:[%s0 + $0x48] sm:$0x33]
    %v43 = vunpack.c.l.b16 %v23
    %v44 = vunpack.c.h.b16 %v23
    %v45 = vunpack.c.l.b16 %v24
    %v46 = vunpack.c.h.b16 %v24
    %v47 = vunpack.c.l.b16 %v25
    %v48 = vunpack.c.h.b16 %v25
    %v49 = vunpack.c.l.b16 %v26
    %v50 = vunpack.c.h.b16 %v26
    %v51 = vunpack.c.l.b16 %v27
    %v52 = vunpack.c.h.b16 %v27
    %v53 = vunpack.c.l.b16 %v28
    %v54 = vunpack.c.h.b16 %v28
    %v55 = vunpack.c.l.b16 %v29
    %v56 = vunpack.c.h.b16 %v29
    %v57 = vunpack.c.l.b16 %v30
    %v58 = vunpack.c.h.b16 %v30
    %v59 = vunpack.c.l.b16 %v31
    %v60 = vunpack.c.h.b16 %v31
    %v61 = vunpack.c.l.b16 %v32
    %v62 = vunpack.c.h.b16 %v32
    %v63 = vpack.c.b16 %v47, %v43
    %v64 = vpack.c.b16 %v48, %v44
    %v65 = vpack.c.b16 %v49, %v45
    %v66 = vpack.c.b16 %v50, %v46
    %v67 = vpack.c.b16 %v55, %v51
    %v68 = vpack.c.b16 %v56, %v52
    %v69 = vpack.c.b16 %v57, %v53
    %v70 = vpack.c.b16 %v58, %v54
    %v71 = vpack.c.b16 %v59, %v59
    %v72 = vpack.c.b16 %v60, %v60
    %v73 = vpack.c.b16 %v61, %v61
    %v74 = vpack.c.b16 %v62, %v62
    %vm83 = vcmask 293888
    %v85 = vsel %vm83, %v22, 0
    %vm87 = vcmask 1041408
    %v89 = vsel %vm87, %v71, 0
    %v92 = vsel %vm87, %v72, 0
    %v95 = vsel %vm87, %v73, 0
    %v98 = vsel %vm87, %v74, 0
    %100 = vmatprep.subr.bf16.mxu0 %v64
    %101 = vmatpush1.bf16.msra.mxu0 %v63
    %102 = vmatprep.subr.bf16.mxu0 %v68
    %103 = vmatpush1.bf16.msra.mxu0 %v67
    %104 = vmatprep.subr.bf16.mxu0 %v92
    %105 = vmatpush1.bf16.msra.mxu0 %v89
    %106 = vmatprep.subr.bf16.mxu0 0
    %107 = vmatpush1.bf16.msra.mxu0 0
    %108 = vmatprep.subr.bf16.mxu0 0
    %109 = vmatpush1.bf16.msra.mxu0 0
    %110 = vmatprep.subr.bf16.mxu0 0
    %111 = vmatpush1.bf16.msra.mxu0 0
    %112 = vmatprep.subr.bf16.mxu0 0
    %113 = vmatpush1.bf16.msra.mxu0 0
    %114 = vmatprep.subr.bf16.mxu0 0
    %115 = vmatpush1.bf16.msra.mxu0 0
    %116 = vmatprep.subr.bf16.mxu0 0
    %117 = vmatpush1.bf16.msra.mxu0 0
    %118 = vmatprep.subr.bf16.mxu0 0
    %119 = vmatpush1.bf16.msra.mxu0 0
    %120 = vmatprep.subr.bf16.mxu0 0
    %121 = vmatpush1.bf16.msra.mxu0 0
    %122 = vmatprep.subr.bf16.mxu0 0
    %123 = vmatpush1.bf16.msra.mxu0 0
    %124 = vmatprep.subr.bf16.mxu0 0
    %125 = vmatpush1.bf16.msra.mxu0 0
    %126 = vmatprep.subr.bf16.mxu0 0
    %127 = vmatpush1.bf16.msra.mxu0 0
    %128 = vmatprep.subr.bf16.mxu0 0
    %129 = vmatpush1.bf16.msra.mxu0 0
    %130 = vmatprep.subr.bf16.mxu0 0
    %131 = vmatpush1.bf16.msra.mxu0 0
    %132 = vmatprep.mubr.bf16.mxu0 0
    %133 = vmatmul.mubr.bf16.gmra.mrb[0].mxu0 %v85
    %v134 = vpop.f32.mrb[0].mxu0
    %v135 = vadd.f32 0.0, %v134
    %v136 = vpop.f32.mrb[0].mxu0
    %v137 = vadd.f32 0.0, %v136
    %v138 = vpop.f32.mrb[0].mxu0
    %v139 = vpop.f32.mrb[0].mxu0
    %140 = vdwg.mxu0
    %141 = vmatprep.subr.bf16.mxu0 %v66
    %142 = vmatpush1.bf16.msra.mxu0 %v65
    %143 = vmatprep.subr.bf16.mxu0 %v70
    %144 = vmatpush1.bf16.msra.mxu0 %v69
    %145 = vmatprep.subr.bf16.mxu0 %v98
    %146 = vmatpush1.bf16.msra.mxu0 %v95
    %147 = vmatprep.subr.bf16.mxu0 0
    %148 = vmatpush1.bf16.msra.mxu0 0
    %149 = vmatprep.subr.bf16.mxu0 0
    %150 = vmatpush1.bf16.msra.mxu0 0
    %151 = vmatprep.subr.bf16.mxu0 0
    %152 = vmatpush1.bf16.msra.mxu0 0
    %153 = vmatprep.subr.bf16.mxu0 0
    %154 = vmatpush1.bf16.msra.mxu0 0
    %155 = vmatprep.subr.bf16.mxu0 0
    %156 = vmatpush1.bf16.msra.mxu0 0
    %157 = vmatprep.subr.bf16.mxu0 0
    %158 = vmatpush1.bf16.msra.mxu0 0
    %159 = vmatprep.subr.bf16.mxu0 0
    %160 = vmatpush1.bf16.msra.mxu0 0
    %161 = vmatprep.subr.bf16.mxu0 0
    %162 = vmatpush1.bf16.msra.mxu0 0
    %163 = vmatprep.subr.bf16.mxu0 0
    %164 = vmatpush1.bf16.msra.mxu0 0
    %165 = vmatprep.subr.bf16.mxu0 0
    %166 = vmatpush1.bf16.msra.mxu0 0
    %167 = vmatprep.subr.bf16.mxu0 0
    %168 = vmatpush1.bf16.msra.mxu0 0
    %169 = vmatprep.subr.bf16.mxu0 0
    %170 = vmatpush1.bf16.msra.mxu0 0
    %171 = vmatprep.subr.bf16.mxu0 0
    %172 = vmatpush1.bf16.msra.mxu0 0
    %173 = vmatprep.mubr.bf16.mxu0 0
    %174 = vmatmul.mubr.bf16.gmra.mrb[0].mxu0 %v85
    %v175 = vpop.f32.mrb[0].mxu0
    %v176 = vadd.f32 0.0, %v175
    %v177 = vpop.f32.mrb[0].mxu0
    %v178 = vadd.f32 0.0, %v177
    %v179 = vpop.f32.mrb[0].mxu0
    %v180 = vpop.f32.mrb[0].mxu0
    %181 = vdwg.mxu0
    %v182 = vmax.f32 %v135, %v137
    %v183 = vmax.f32 %v176, %v178
    %v184 = vmax.f32 %v182, %v183
    %v185 = vld [vmem:[%s2] sm:$0xff]
    %187 = vset.pattern.permute.xlu0 0
    %188 = vperm.xlu0 %187, %v185
    %v189 = vpop.permute.xlu0 %188
    %v191 = vadd.f32 %v184, %v189
    %v192 = vmax.f32 %v191, 0.0
    %v194 = vrot.slane %v192, 1
    %v196 = vrot.slane %v192, 2
    %v198 = vrot.slane %v192, 3
    %v200 = vrot.slane %v192, 4
    %v202 = vrot.slane %v192, 5
    %v204 = vrot.slane %v192, 6
    %v206 = vrot.slane %v192, 7
    %v208 = vpack.c.bf16 %v192, %v192
    %v209 = vpack.c.bf16 %v194, %v194
    %v210 = vpack.c.bf16 %v196, %v196
    %v211 = vpack.c.bf16 %v198, %v198
    %v212 = vpack.c.bf16 %v200, %v200
    %v213 = vpack.c.bf16 %v202, %v202
    %v214 = vpack.c.bf16 %v204, %v204
    %v215 = vpack.c.bf16 %v206, %v206
    %v216 = vld [vmem:[%s3] sm:$0xff]
    %v217 = vld [vmem:[%s3 + $0x8] sm:$0xff]
    %v218 = vld [vmem:[%s3 + $0x10] sm:$0xff]
    %v219 = vld [vmem:[%s3 + $0x18] sm:$0xff]
    %v220 = vld [vmem:[%s3 + $0x20] sm:$0xff]
    %v221 = vld [vmem:[%s3 + $0x28] sm:$0xff]
    %v222 = vld [vmem:[%s3 + $0x30] sm:$0xff]
    %v223 = vld [vmem:[%s3 + $0x38] sm:$0xff]
    %v224 = vld [vmem:[%s3 + $0x40] sm:$0x33]
    %v225 = vld [vmem:[%s3 + $0x48] sm:$0x33]
    %v226 = vld [vmem:[%s3 + $0x50] sm:$0x33]
    %v227 = vld [vmem:[%s3 + $0x58] sm:$0x33]
    %v228 = vld [vmem:[%s4] sm:$0x1]
    %v241 = vunpack.c.l.b16 %v216
    %v242 = vunpack.c.h.b16 %v216
    %v243 = vunpack.c.l.b16 %v217
    %v244 = vunpack.c.h.b16 %v217
    %v245 = vunpack.c.l.b16 %v218
    %v246 = vunpack.c.h.b16 %v218
    %v247 = vunpack.c.l.b16 %v219
    %v248 = vunpack.c.h.b16 %v219
    %v249 = vunpack.c.l.b16 %v220
    %v250 = vunpack.c.h.b16 %v220
    %v251 = vunpack.c.l.b16 %v221
    %v252 = vunpack.c.h.b16 %v221
    %v253 = vunpack.c.l.b16 %v222
    %v254 = vunpack.c.h.b16 %v222
    %v255 = vunpack.c.l.b16 %v223
    %v256 = vunpack.c.h.b16 %v223
    %v257 = vunpack.c.l.b16 %v224
    %v258 = vunpack.c.h.b16 %v224
    %v259 = vunpack.c.l.b16 %v225
    %v260 = vunpack.c.h.b16 %v225
    %v261 = vunpack.c.l.b16 %v226
    %v262 = vunpack.c.h.b16 %v226
    %v263 = vunpack.c.l.b16 %v227
    %v264 = vunpack.c.h.b16 %v227
    %v265 = vpack.c.b16 %v249, %v241
    %v266 = vpack.c.b16 %v250, %v242
    %v267 = vpack.c.b16 %v251, %v243
    %v268 = vpack.c.b16 %v252, %v244
    %v269 = vpack.c.b16 %v253, %v245
    %v270 = vpack.c.b16 %v254, %v246
    %v271 = vpack.c.b16 %v255, %v247
    %v272 = vpack.c.b16 %v256, %v248
    %v273 = vpack.c.b16 %v257, %v257
    %v274 = vpack.c.b16 %v258, %v258
    %v275 = vpack.c.b16 %v259, %v259
    %v276 = vpack.c.b16 %v260, %v260
    %v277 = vpack.c.b16 %v261, %v261
    %v278 = vpack.c.b16 %v262, %v262
    %v279 = vpack.c.b16 %v263, %v263
    %v280 = vpack.c.b16 %v264, %v264
    %297 = vmatprep.subr.bf16.mxu0 %v266
    %298 = vmatpush1.bf16.xpose.msra.mxu0 %v265
    %299 = vmatprep.subr.bf16.mxu0 %v274
    %300 = vmatpush1.bf16.xpose.msra.mxu0 %v273
    %301 = vmatprep.subr.bf16.mxu0 0
    %302 = vmatpush1.bf16.xpose.msra.mxu0 0
    %303 = vmatprep.subr.bf16.mxu0 0
    %304 = vmatpush1.bf16.xpose.msra.mxu0 0
    %305 = vmatprep.subr.bf16.mxu0 0
    %306 = vmatpush1.bf16.xpose.msra.mxu0 0
    %307 = vmatprep.subr.bf16.mxu0 0
    %308 = vmatpush1.bf16.xpose.msra.mxu0 0
    %309 = vmatprep.subr.bf16.mxu0 0
    %310 = vmatpush1.bf16.xpose.msra.mxu0 0
    %311 = vmatprep.subr.bf16.mxu0 0
    %312 = vmatpush1.bf16.xpose.msra.mxu0 0
    %313 = vmatprep.subr.bf16.mxu0 0
    %314 = vmatpush1.bf16.xpose.msra.mxu0 0
    %315 = vmatprep.subr.bf16.mxu0 0
    %316 = vmatpush1.bf16.xpose.msra.mxu0 0
    %317 = vmatprep.subr.bf16.mxu0 0
    %318 = vmatpush1.bf16.xpose.msra.mxu0 0
    %319 = vmatprep.subr.bf16.mxu0 0
    %320 = vmatpush1.bf16.xpose.msra.mxu0 0
    %321 = vmatprep.subr.bf16.mxu0 0
    %322 = vmatpush1.bf16.xpose.msra.mxu0 0
    %323 = vmatprep.subr.bf16.mxu0 0
    %324 = vmatpush1.bf16.xpose.msra.mxu0 0
    %325 = vmatprep.subr.bf16.mxu0 0
    %326 = vmatpush1.bf16.xpose.msra.mxu0 0
    %327 = vmatprep.subr.bf16.mxu0 0
    %328 = vmatpush1.bf16.xpose.msra.mxu0 0
    %329 = vmatprep.mubr.bf16.mxu0 %v209
    %330 = vmatmul.mubr.bf16.gmra.mrb[0].mxu0 %v208
    %v331 = vpop.f32.mrb[0].mxu0
    %v332 = vadd.f32 %v228, %v331
    %v333 = vpop.f32.mrb[0].mxu0
    %v334 = vpop.f32.mrb[0].mxu0
    %v335 = vpop.f32.mrb[0].mxu0
    %336 = vdwg.mxu0
    %337 = vmatprep.subr.bf16.mxu0 %v268
    %338 = vmatpush1.bf16.xpose.msra.mxu0 %v267
    %339 = vmatprep.subr.bf16.mxu0 %v276
    %340 = vmatpush1.bf16.xpose.msra.mxu0 %v275
    %341 = vmatprep.subr.bf16.mxu0 0
    %342 = vmatpush1.bf16.xpose.msra.mxu0 0
    %343 = vmatprep.subr.bf16.mxu0 0
    %344 = vmatpush1.bf16.xpose.msra.mxu0 0
    %345 = vmatprep.subr.bf16.mxu0 0
    %346 = vmatpush1.bf16.xpose.msra.mxu0 0
    %347 = vmatprep.subr.bf16.mxu0 0
    %348 = vmatpush1.bf16.xpose.msra.mxu0 0
    %349 = vmatprep.subr.bf16.mxu0 0
    %350 = vmatpush1.bf16.xpose.msra.mxu0 0
    %351 = vmatprep.subr.bf16.mxu0 0
    %352 = vmatpush1.bf16.xpose.msra.mxu0 0
    %353 = vmatprep.subr.bf16.mxu0 0
    %354 = vmatpush1.bf16.xpose.msra.mxu0 0
    %355 = vmatprep.subr.bf16.mxu0 0
    %356 = vmatpush1.bf16.xpose.msra.mxu0 0
    %357 = vmatprep.subr.bf16.mxu0 0
    %358 = vmatpush1.bf16.xpose.msra.mxu0 0
    %359 = vmatprep.subr.bf16.mxu0 0
    %360 = vmatpush1.bf16.xpose.msra.mxu0 0
    %361 = vmatprep.subr.bf16.mxu0 0
    %362 = vmatpush1.bf16.xpose.msra.mxu0 0
    %363 = vmatprep.subr.bf16.mxu0 0
    %364 = vmatpush1.bf16.xpose.msra.mxu0 0
    %365 = vmatprep.subr.bf16.mxu0 0
    %366 = vmatpush1.bf16.xpose.msra.mxu0 0
    %367 = vmatprep.subr.bf16.mxu0 0
    %368 = vmatpush1.bf16.xpose.msra.mxu0 0
    %369 = vmatprep.mubr.bf16.mxu0 %v211
    %370 = vmatmul.mubr.bf16.gmra.mrb[0].mxu0 %v210
    %v371 = vpop.f32.mrb[0].mxu0
    %v372 = vadd.f32 %v332, %v371
    %v373 = vpop.f32.mrb[0].mxu0
    %v374 = vpop.f32.mrb[0].mxu0
    %v375 = vpop.f32.mrb[0].mxu0
    %376 = vdwg.mxu0
    %377 = vmatprep.subr.bf16.mxu0 %v270
    %378 = vmatpush1.bf16.xpose.msra.mxu0 %v269
    %379 = vmatprep.subr.bf16.mxu0 %v278
    %380 = vmatpush1.bf16.xpose.msra.mxu0 %v277
    %381 = vmatprep.subr.bf16.mxu0 0
    %382 = vmatpush1.bf16.xpose.msra.mxu0 0
    %383 = vmatprep.subr.bf16.mxu0 0
    %384 = vmatpush1.bf16.xpose.msra.mxu0 0
    %385 = vmatprep.subr.bf16.mxu0 0
    %386 = vmatpush1.bf16.xpose.msra.mxu0 0
    %387 = vmatprep.subr.bf16.mxu0 0
    %388 = vmatpush1.bf16.xpose.msra.mxu0 0
    %389 = vmatprep.subr.bf16.mxu0 0
    %390 = vmatpush1.bf16.xpose.msra.mxu0 0
    %391 = vmatprep.subr.bf16.mxu0 0
    %392 = vmatpush1.bf16.xpose.msra.mxu0 0
    %393 = vmatprep.subr.bf16.mxu0 0
    %394 = vmatpush1.bf16.xpose.msra.mxu0 0
    %395 = vmatprep.subr.bf16.mxu0 0
    %396 = vmatpush1.bf16.xpose.msra.mxu0 0
    %397 = vmatprep.subr.bf16.mxu0 0
    %398 = vmatpush1.bf16.xpose.msra.mxu0 0
    %399 = vmatprep.subr.bf16.mxu0 0
    %400 = vmatpush1.bf16.xpose.msra.mxu0 0
    %401 = vmatprep.subr.bf16.mxu0 0
    %402 = vmatpush1.bf16.xpose.msra.mxu0 0
    %403 = vmatprep.subr.bf16.mxu0 0
    %404 = vmatpush1.bf16.xpose.msra.mxu0 0
    %405 = vmatprep.subr.bf16.mxu0 0
    %406 = vmatpush1.bf16.xpose.msra.mxu0 0
    %407 = vmatprep.subr.bf16.mxu0 0
    %408 = vmatpush1.bf16.xpose.msra.mxu0 0
    %409 = vmatprep.mubr.bf16.mxu0 %v213
    %410 = vmatmul.mubr.bf16.gmra.mrb[0].mxu0 %v212
    %v411 = vpop.f32.mrb[0].mxu0
    %v412 = vadd.f32 %v372, %v411
    %v413 = vpop.f32.mrb[0].mxu0
    %v414 = vpop.f32.mrb[0].mxu0
    %v415 = vpop.f32.mrb[0].mxu0
    %416 = vdwg.mxu0
    %417 = vmatprep.subr.bf16.mxu0 %v272
    %418 = vmatpush1.bf16.xpose.msra.mxu0 %v271
    %419 = vmatprep.subr.bf16.mxu0 %v280
    %420 = vmatpush1.bf16.xpose.msra.mxu0 %v279
    %421 = vmatprep.subr.bf16.mxu0 0
    %422 = vmatpush1.bf16.xpose.msra.mxu0 0
    %423 = vmatprep.subr.bf16.mxu0 0
    %424 = vmatpush1.bf16.xpose.msra.mxu0 0
    %425 = vmatprep.subr.bf16.mxu0 0
    %426 = vmatpush1.bf16.xpose.msra.mxu0 0
    %427 = vmatprep.subr.bf16.mxu0 0
    %428 = vmatpush1.bf16.xpose.msra.mxu0 0
    %429 = vmatprep.subr.bf16.mxu0 0
    %430 = vmatpush1.bf16.xpose.msra.mxu0 0
    %431 = vmatprep.subr.bf16.mxu0 0
    %432 = vmatpush1.bf16.xpose.msra.mxu0 0
    %433 = vmatprep.subr.bf16.mxu0 0
    %434 = vmatpush1.bf16.xpose.msra.mxu0 0
    %435 = vmatprep.subr.bf16.mxu0 0
    %436 = vmatpush1.bf16.xpose.msra.mxu0 0
    %437 = vmatprep.subr.bf16.mxu0 0
    %438 = vmatpush1.bf16.xpose.msra.mxu0 0
    %439 = vmatprep.subr.bf16.mxu0 0
    %440 = vmatpush1.bf16.xpose.msra.mxu0 0
    %441 = vmatprep.subr.bf16.mxu0 0
    %442 = vmatpush1.bf16.xpose.msra.mxu0 0
    %443 = vmatprep.subr.bf16.mxu0 0
    %444 = vmatpush1.bf16.xpose.msra.mxu0 0
    %445 = vmatprep.subr.bf16.mxu0 0
    %446 = vmatpush1.bf16.xpose.msra.mxu0 0
    %447 = vmatprep.subr.bf16.mxu0 0
    %448 = vmatpush1.bf16.xpose.msra.mxu0 0
    %449 = vmatprep.mubr.bf16.mxu0 %v215
    %450 = vmatmul.mubr.bf16.gmra.mrb[0].mxu0 %v214
    %v451 = vpop.f32.mrb[0].mxu0
    %v452 = vadd.f32 %v412, %v451
    %v453 = vpop.f32.mrb[0].mxu0
    %v454 = vpop.f32.mrb[0].mxu0
    %v455 = vpop.f32.mrb[0].mxu0
    %456 = vdwg.mxu0
    %v458 = vrot.slane %v452, 7
    %459 = vrot.lane.b32.xlu0 %v458, 118
    %v460 = vpop.permute.xlu0 %459
    %vm462 = vcmask 1040384
    %v463 = vsel %vm462, %v452, %v460
    %vm464 = vcmask 74752
    %465 = vst.msk [vmem:[#allocation2] sm:$0x3] %vm464, %v463
    // Predicated region
    $region22: #{convnet_forward.1} parent=1 // pred_check
      _
    $region23: #{convnet_forward.1} parent=1 // pred_check_branch
      %467 = sbr.rel (0) target = $region25
    $region24: #{convnet_forward.1} parent=1 // pred_region
      %s469 = ssub.s32 32, 32
      %470 = vsyncadd [#allocation3], %s469
      %s472 = sshll.u32 [#allocation2], 4
      %s473 = int_to_ptr.vmem [resolvable:$true] %s472
      %475 = dma.vmem_to_hbm [thread:$0]  %s473, 32, %s5, [#allocation3]
    $region25: #{convnet_forward.1} parent=1 // pred_fallthru
      _
    // Predicated region
    $region26: #{convnet_forward.1} parent=1 // pred_check
      _
    $region27: #{convnet_forward.1} parent=1 // pred_check_branch
      %477 = sbr.rel (0) target = $region29
    $region28: #{convnet_forward.1} parent=1 // pred_region
      %478 = dma.done [#allocation3], 32
    $region29: #{convnet_forward.1} parent=1 // pred_fallthru
      _
    %479 = vsyncpa [#allocation3], 1

</llo_original>
